<compile_context>
chip_gen: v7x
topology: tpu7x:2x2x1
jax: 0.10.0
libtpu: 0.0.40
codegen_flags: <defaults>
</compile_context>

<pallas_src>
import jax
import jax.numpy as jnp
from jax.experimental import pallas as pl
from jax.experimental.pallas import tpu as pltpu


def edge_encoder_kernel(gidx_ref, tab_ref, out_ref):
    """One grid step handles a tile of edges.

    gidx_ref : [tile_e, F]  int32   global indices into the fused table
    tab_ref  : [K, H]       float32 fused (concatenated + zero-padded) table
    out_ref  : [tile_e, H]  float32
    """
    tile_e, n_feat = gidx_ref.shape
    k = tab_ref.shape[0]

    # Lane-dense column iota: [tile_e, K] (K is a multiple of 128).
    col = jax.lax.broadcasted_iota(jnp.int32, (tile_e, k), 1)

    # Multi-hot: F ones per row, in disjoint per-feature column ranges, so a
    # logical OR of the per-feature one-hots is exact.
    hits = col == gidx_ref[:, 0:1]
    for f in range(1, n_feat):  # static unroll over the (few) bond features
        hits = jnp.logical_or(hits, col == gidx_ref[:, f:f + 1])

    # Single fused MXU matmul: [tile_e, K] @ [K, H] -> [tile_e, H].
    out_ref[...] = jnp.dot(hits.astype(jnp.float32), tab_ref[...],
                           preferred_element_type=jnp.float32)


def edge_encoder(edge_attr, fused_table, offsets, *, tile_e=1024):
    """edge_attr: [E, F] int32, fused_table: [K, H] f32, offsets: [F] int32.

    Returns [E, H] f32 = sum over features f of fused_table[edge_attr[:, f] + offsets[f]].
    """
    E, F = edge_attr.shape
    K, H = fused_table.shape
    assert K % 128 == 0, "fused vocab axis must be padded to a multiple of 128"

    # Fold per-feature offsets into the indices (hoisted out of the kernel).
    gidx = edge_attr.astype(jnp.int32) + offsets[None, :].astype(jnp.int32)

    # Tile sizing: big tiles to amortize per-step overhead, but never bigger
    # than the (sublane-rounded) edge count; pad E up to a tile multiple.
    tile_e = min(tile_e, pl.cdiv(E, 8) * 8)
    e_pad = pl.cdiv(E, tile_e) * tile_e
    if e_pad != E:
        # Padded edges get index K (outside the iota range) -> all-zero rows.
        gidx = jnp.pad(gidx, ((0, e_pad - E), (0, 0)), constant_values=K)

    out = pl.pallas_call(
        edge_encoder_kernel,
        out_shape=jax.ShapeDtypeStruct((e_pad, H), jnp.float32),
        grid=(e_pad // tile_e,),
        in_specs=[
            pl.BlockSpec((tile_e, F), lambda i: (i, 0)),
            pl.BlockSpec((K, H), lambda i: (0, 0)),  # table resident across steps
        ],
        out_specs=pl.BlockSpec((tile_e, H), lambda i: (i, 0)),
        compiler_params=pltpu.CompilerParams(
            dimension_semantics=("parallel",)),  # shards edge tiles across v7x's 2 TCs
    )(gidx, fused_table)

    return out[:E]


def make_edge_encoder_params(key, feature_dims, emb_dim):
    """Deterministic xavier_uniform init per feature table.

    Returns (fused_table [K, H] with K padded to a multiple of 128,
             offsets [F] int32, per-feature weights list for reference).
    """
    weights = []
    for i, dim in enumerate(feature_dims):
        k = jax.random.fold_in(key, i)
        # torch xavier_uniform on weight [dim, emb_dim]: bound = sqrt(6/(dim+emb_dim))
        bound = (6.0 / (dim + emb_dim)) ** 0.5
        weights.append(
            jax.random.uniform(k, (dim, emb_dim), jnp.float32, -bound, bound))

    fused = jnp.concatenate(weights, axis=0)              # [sum(dims), H]
    total = fused.shape[0]
    k_pad = pl.cdiv(total, 128) * 128
    fused = jnp.pad(fused, ((0, k_pad - total), (0, 0)))  # zero rows -> contribute 0

    offsets = jnp.asarray(
        [0] + list(jnp.cumsum(jnp.asarray(feature_dims[:-1], jnp.int32))),
        jnp.int32)                                         # [F]
    return fused, offsets, weights


if __name__ == "__main__":
    key = jax.random.PRNGKey(0)

    # Analogue of OGB get_bond_feature_dims()
    feature_dims = [5, 6, 2]
    emb_dim = 32
    num_edges = 100  # deliberately not a multiple of the tile to exercise padding

    k_tab, k_idx = jax.random.split(key)
    fused_table, offsets, weights = make_edge_encoder_params(
        k_tab, feature_dims, emb_dim)

    # edge_attr[:, i] in [0, feature_dims[i])
    cols = []
    for i, dim in enumerate(feature_dims):
        ki = jax.random.fold_in(k_idx, i)
        cols.append(jax.random.randint(ki, (num_edges,), 0, dim, jnp.int32))
    edge_attr = jnp.stack(cols, axis=1)  # [E, F] int32

    out = edge_encoder(edge_attr, fused_table, offsets)
    out = jax.block_until_ready(out)

    # Pure-JAX reference: sum of per-feature embedding lookups.
    ref = jnp.zeros((num_edges, emb_dim), jnp.float32)
    for i in range(len(feature_dims)):
        ref = ref + jnp.take(weights[i], edge_attr[:, i], axis=0)

    assert out.shape == (num_edges, emb_dim)
    assert jnp.allclose(out, ref, atol=1e-5, rtol=1e-5)
    print("KERNEL_OK")
</pallas_src>

<mosaic_0001>
module attributes {stable_mosaic.version = 11 : i64} {
  func.func @edge_encoder_kernel(%arg0: i32, %arg1: memref<104x3xi32, #tpu.memory_space<vmem>>, %arg2: memref<128x32xf32, #tpu.memory_space<vmem>>, %arg3: memref<104x32xf32, #tpu.memory_space<vmem>>) attributes {dimension_semantics = [#tpu.dimension_semantics<parallel>], iteration_bounds = array<i64: 1>, scalar_prefetch = 0 : i64, scratch_operands = 0 : i64, tpu.core_type = #tpu.core_type<tc>, window_params = [{transform_indices = @transform_0, window_bounds = array<i64: 104, 3>}, {pipeline_mode = #tpu.pipeline_mode<synchronous>, transform_indices = @transform_1, window_bounds = array<i64: 128, 32>}, {transform_indices = @transform_2, window_bounds = array<i64: 104, 32>}]} {
    %0 = tpu.iota {dimensions = array<i32: 1>} : vector<104x128xi32>
    %c0 = arith.constant 0 : index
    %c0_0 = arith.constant 0 : index
    %1 = vector.load %arg1[%c0, %c0_0] : memref<104x3xi32, #tpu.memory_space<vmem>>, vector<104x1xi32>
    %2 = vector.broadcast %1 : vector<104x1xi32> to vector<104x128xi32>
    %3 = arith.cmpi eq, %0, %2 : vector<104x128xi32>
    %c0_1 = arith.constant 0 : index
    %c1 = arith.constant 1 : index
    %4 = vector.load %arg1[%c0_1, %c1] : memref<104x3xi32, #tpu.memory_space<vmem>>, vector<104x1xi32>
    %5 = vector.broadcast %4 : vector<104x1xi32> to vector<104x128xi32>
    %6 = arith.cmpi eq, %0, %5 : vector<104x128xi32>
    %7 = arith.ori %3, %6 : vector<104x128xi1>
    %c0_2 = arith.constant 0 : index
    %c2 = arith.constant 2 : index
    %8 = vector.load %arg1[%c0_2, %c2] : memref<104x3xi32, #tpu.memory_space<vmem>>, vector<104x1xi32>
    %9 = vector.broadcast %8 : vector<104x1xi32> to vector<104x128xi32>
    %10 = arith.cmpi eq, %0, %9 : vector<104x128xi32>
    %11 = arith.ori %7, %10 : vector<104x128xi1>
    %12 = arith.extui %11 : vector<104x128xi1> to vector<104x128xi32>
    %13 = arith.sitofp %12 : vector<104x128xi32> to vector<104x128xf32>
    %c0_3 = arith.constant 0 : index
    %c0_4 = arith.constant 0 : index
    %14 = vector.load %arg2[%c0_3, %c0_4] : memref<128x32xf32, #tpu.memory_space<vmem>>, vector<128x32xf32>
    %cst = arith.constant dense<0.000000e+00> : vector<104x32xf32>
    %15 = tpu.matmul %13, %14, %cst {dimension_numbers = #tpu.dot_dimension_numbers<[1], [0], [0], [1], [0, 0, 1, 1], [], []>} : vector<104x128xf32>, vector<128x32xf32>, vector<104x32xf32> -> vector<104x32xf32>
    %c0_5 = arith.constant 0 : index
    %c0_6 = arith.constant 0 : index
    %16 = vector.load %arg3[%c0_5, %c0_6] : memref<104x32xf32, #tpu.memory_space<vmem>>, vector<104x32xf32>
    tpu.vector_store %arg3[%c0_5, %c0_6], %15 {strides = array<i32>} : memref<104x32xf32, #tpu.memory_space<vmem>>, vector<104x32xf32>,
    return
  }
  func.func @transform_0(%arg0: i32) -> (i32, i32) {
    %c0_i32 = arith.constant 0 : i32
    %c0_i32_0 = arith.constant 0 : i32
    return %arg0, %c0_i32 : i32, i32
  }
  func.func @transform_1(%arg0: i32) -> (i32, i32) {
    %c0_i32 = arith.constant 0 : i32
    %c0_i32_0 = arith.constant 0 : i32
    %c0_i32_1 = arith.constant 0 : i32
    return %c0_i32, %c0_i32_0 : i32, i32
  }
  func.func @transform_2(%arg0: i32) -> (i32, i32) {
    %c0_i32 = arith.constant 0 : i32
    %c0_i32_0 = arith.constant 0 : i32
    return %arg0, %c0_i32 : i32, i32
  }
}

</mosaic_0001>

<llo_original>
// kernel: tpu_custom_call.1
$region0: #{tpu_custom_call.1}
  #allocation0 [shape = 'u32[]', space=smem, size = 0x4, offset = 0x4, fixed_abs, tag = 'smem constant byte address 0x4 - core index']
  #allocation1 [shape = 'u32[144,128]{1,0:T(1,128)}', space=vmem, size = 0x12000, scoped, tag = 'internal scratch']
  %s0 = inlined_call_operand.vmem [shape: s32[104,3], index: 0, kind: input, shape index: {}]
  %s1 = inlined_call_operand.vmem [shape: f32[128,32], index: 1, kind: input, shape index: {}]
  %s2 = inlined_call_operand.vmem [shape: f32[104,32], index: 2, kind: output, shape index: {}]
  %s3 = sld [smem:[#allocation0]]
  $region18: #{tpu_custom_call.1} parent=0
    _
  %s5 = ssub.s32 1, %s3
  %s6 = scalar_select 0, %s5, %s3
  // Predicated region
  $region2: #{tpu_custom_call.1} parent=0 // pred_check
    _
  $region3: #{tpu_custom_call.1} parent=0 // pred_check_branch
    %8 = sbr.rel (0) target = $region5
  $region4: #{tpu_custom_call.1} parent=0 // pred_region
    _
  $region5: #{tpu_custom_call.1} parent=0 // pred_fallthru
    _
  // Predicated region
  $region6: #{tpu_custom_call.1} parent=0 // pred_check
    _
  $region7: #{tpu_custom_call.1} parent=0 // pred_check_branch
    %10 = sbr.rel (0) target = $region9
  $region8: #{tpu_custom_call.1} parent=0 // pred_region
    _
  $region9: #{tpu_custom_call.1} parent=0 // pred_fallthru
    _
  %v11 = vlaneseq
  %v12 = vand.u32 %v11, 127
  %v13 = vld [vmem:[%s0] sm:$0xff]
  %v14 = vld [vmem:[%s0 + $0x8] sm:$0xff]
  %v15 = vld [vmem:[%s0 + $0x10] sm:$0xff]
  %v16 = vld [vmem:[%s0 + $0x18] sm:$0xff]
  %v17 = vld [vmem:[%s0 + $0x20] sm:$0xff]
  %v18 = vld [vmem:[%s0 + $0x28] sm:$0xff]
  %v19 = vld [vmem:[%s0 + $0x30] sm:$0xff]
  %v20 = vld [vmem:[%s0 + $0x38] sm:$0xff]
  %v21 = vld [vmem:[%s0 + $0x40] sm:$0xff]
  %v22 = vld [vmem:[%s0 + $0x48] sm:$0xff]
  %v23 = vld [vmem:[%s0 + $0x50] sm:$0xff]
  %v24 = vld [vmem:[%s0 + $0x58] sm:$0xff]
  %v25 = vld [vmem:[%s0 + $0x60] sm:$0xff]
  %26 = vset.pattern.permute.xlu0 0
  %27 = vperm.xlu0 %26, %v13
  %v28 = vpop.permute.xlu0 %27
  %29 = vset.pattern.permute.xlu0 0
  %30 = vperm.xlu0 %29, %v14
  %v31 = vpop.permute.xlu0 %30
  %32 = vset.pattern.permute.xlu0 0
  %33 = vperm.xlu0 %32, %v15
  %v34 = vpop.permute.xlu0 %33
  %35 = vset.pattern.permute.xlu0 0
  %36 = vperm.xlu0 %35, %v16
  %v37 = vpop.permute.xlu0 %36
  %38 = vset.pattern.permute.xlu0 0
  %39 = vperm.xlu0 %38, %v17
  %v40 = vpop.permute.xlu0 %39
  %41 = vset.pattern.permute.xlu0 0
  %42 = vperm.xlu0 %41, %v18
  %v43 = vpop.permute.xlu0 %42
  %44 = vset.pattern.permute.xlu0 0
  %45 = vperm.xlu0 %44, %v19
  %v46 = vpop.permute.xlu0 %45
  %47 = vset.pattern.permute.xlu0 0
  %48 = vperm.xlu0 %47, %v20
  %v49 = vpop.permute.xlu0 %48
  %50 = vset.pattern.permute.xlu0 0
  %51 = vperm.xlu0 %50, %v21
  %v52 = vpop.permute.xlu0 %51
  %53 = vset.pattern.permute.xlu0 0
  %54 = vperm.xlu0 %53, %v22
  %v55 = vpop.permute.xlu0 %54
  %56 = vset.pattern.permute.xlu0 0
  %57 = vperm.xlu0 %56, %v23
  %v58 = vpop.permute.xlu0 %57
  %59 = vset.pattern.permute.xlu0 0
  %60 = vperm.xlu0 %59, %v24
  %v61 = vpop.permute.xlu0 %60
  %62 = vset.pattern.permute.xlu0 0
  %63 = vperm.xlu0 %62, %v25
  %v64 = vpop.permute.xlu0 %63
  %vm65 = vcmp.eq.s32.totalorder %v12, %v28
  %vm66 = vcmp.eq.s32.totalorder %v12, %v31
  %vm67 = vcmp.eq.s32.totalorder %v12, %v34
  %vm68 = vcmp.eq.s32.totalorder %v12, %v37
  %vm69 = vcmp.eq.s32.totalorder %v12, %v40
  %vm70 = vcmp.eq.s32.totalorder %v12, %v43
  %vm71 = vcmp.eq.s32.totalorder %v12, %v46
  %vm72 = vcmp.eq.s32.totalorder %v12, %v49
  %vm73 = vcmp.eq.s32.totalorder %v12, %v52
  %vm74 = vcmp.eq.s32.totalorder %v12, %v55
  %vm75 = vcmp.eq.s32.totalorder %v12, %v58
  %vm76 = vcmp.eq.s32.totalorder %v12, %v61
  %vm77 = vcmp.eq.s32.totalorder %v12, %v64
  %78 = vset.pattern.permute.xlu0 1
  %79 = vperm.xlu0 %78, %v13
  %v80 = vpop.permute.xlu0 %79
  %81 = vset.pattern.permute.xlu0 1
  %82 = vperm.xlu0 %81, %v14
  %v83 = vpop.permute.xlu0 %82
  %84 = vset.pattern.permute.xlu0 1
  %85 = vperm.xlu0 %84, %v15
  %v86 = vpop.permute.xlu0 %85
  %87 = vset.pattern.permute.xlu0 1
  %88 = vperm.xlu0 %87, %v16
  %v89 = vpop.permute.xlu0 %88
  %90 = vset.pattern.permute.xlu0 1
  %91 = vperm.xlu0 %90, %v17
  %v92 = vpop.permute.xlu0 %91
  %93 = vset.pattern.permute.xlu0 1
  %94 = vperm.xlu0 %93, %v18
  %v95 = vpop.permute.xlu0 %94
  %96 = vset.pattern.permute.xlu0 1
  %97 = vperm.xlu0 %96, %v19
  %v98 = vpop.permute.xlu0 %97
  %99 = vset.pattern.permute.xlu0 1
  %100 = vperm.xlu0 %99, %v20
  %v101 = vpop.permute.xlu0 %100
  %102 = vset.pattern.permute.xlu0 1
  %103 = vperm.xlu0 %102, %v21
  %v104 = vpop.permute.xlu0 %103
  %105 = vset.pattern.permute.xlu0 1
  %106 = vperm.xlu0 %105, %v22
  %v107 = vpop.permute.xlu0 %106
  %108 = vset.pattern.permute.xlu0 1
  %109 = vperm.xlu0 %108, %v23
  %v110 = vpop.permute.xlu0 %109
  %111 = vset.pattern.permute.xlu0 1
  %112 = vperm.xlu0 %111, %v24
  %v113 = vpop.permute.xlu0 %112
  %114 = vset.pattern.permute.xlu0 1
  %115 = vperm.xlu0 %114, %v25
  %v116 = vpop.permute.xlu0 %115
  %vm117 = vcmp.eq.s32.totalorder %v12, %v80
  %vm118 = vcmp.eq.s32.totalorder %v12, %v83
  %vm119 = vcmp.eq.s32.totalorder %v12, %v86
  %vm120 = vcmp.eq.s32.totalorder %v12, %v89
  %vm121 = vcmp.eq.s32.totalorder %v12, %v92
  %vm122 = vcmp.eq.s32.totalorder %v12, %v95
  %vm123 = vcmp.eq.s32.totalorder %v12, %v98
  %vm124 = vcmp.eq.s32.totalorder %v12, %v101
  %vm125 = vcmp.eq.s32.totalorder %v12, %v104
  %vm126 = vcmp.eq.s32.totalorder %v12, %v107
  %vm127 = vcmp.eq.s32.totalorder %v12, %v110
  %vm128 = vcmp.eq.s32.totalorder %v12, %v113
  %vm129 = vcmp.eq.s32.totalorder %v12, %v116
  %vm130 = vmor %vm65, %vm117
  %vm131 = vmor %vm66, %vm118
  %vm132 = vmor %vm67, %vm119
  %vm133 = vmor %vm68, %vm120
  %vm134 = vmor %vm69, %vm121
  %vm135 = vmor %vm70, %vm122
  %vm136 = vmor %vm71, %vm123
  %vm137 = vmor %vm72, %vm124
  %vm138 = vmor %vm73, %vm125
  %vm139 = vmor %vm74, %vm126
  %vm140 = vmor %vm75, %vm127
  %vm141 = vmor %vm76, %vm128
  %vm142 = vmor %vm77, %vm129
  %143 = vset.pattern.permute.xlu0 2
  %144 = vperm.xlu0 %143, %v13
  %v145 = vpop.permute.xlu0 %144
  %146 = vset.pattern.permute.xlu0 2
  %147 = vperm.xlu0 %146, %v14
  %v148 = vpop.permute.xlu0 %147
  %149 = vset.pattern.permute.xlu0 2
  %150 = vperm.xlu0 %149, %v15
  %v151 = vpop.permute.xlu0 %150
  %152 = vset.pattern.permute.xlu0 2
  %153 = vperm.xlu0 %152, %v16
  %v154 = vpop.permute.xlu0 %153
  %155 = vset.pattern.permute.xlu0 2
  %156 = vperm.xlu0 %155, %v17
  %v157 = vpop.permute.xlu0 %156
  %158 = vset.pattern.permute.xlu0 2
  %159 = vperm.xlu0 %158, %v18
  %v160 = vpop.permute.xlu0 %159
  %161 = vset.pattern.permute.xlu0 2
  %162 = vperm.xlu0 %161, %v19
  %v163 = vpop.permute.xlu0 %162
  %164 = vset.pattern.permute.xlu0 2
  %165 = vperm.xlu0 %164, %v20
  %v166 = vpop.permute.xlu0 %165
  %167 = vset.pattern.permute.xlu0 2
  %168 = vperm.xlu0 %167, %v21
  %v169 = vpop.permute.xlu0 %168
  %170 = vset.pattern.permute.xlu0 2
  %171 = vperm.xlu0 %170, %v22
  %v172 = vpop.permute.xlu0 %171
  %173 = vset.pattern.permute.xlu0 2
  %174 = vperm.xlu0 %173, %v23
  %v175 = vpop.permute.xlu0 %174
  %176 = vset.pattern.permute.xlu0 2
  %177 = vperm.xlu0 %176, %v24
  %v178 = vpop.permute.xlu0 %177
  %179 = vset.pattern.permute.xlu0 2
  %180 = vperm.xlu0 %179, %v25
  %v181 = vpop.permute.xlu0 %180
  %vm182 = vcmp.eq.s32.totalorder %v12, %v145
  %vm183 = vcmp.eq.s32.totalorder %v12, %v148
  %vm184 = vcmp.eq.s32.totalorder %v12, %v151
  %vm185 = vcmp.eq.s32.totalorder %v12, %v154
  %vm186 = vcmp.eq.s32.totalorder %v12, %v157
  %vm187 = vcmp.eq.s32.totalorder %v12, %v160
  %vm188 = vcmp.eq.s32.totalorder %v12, %v163
  %vm189 = vcmp.eq.s32.totalorder %v12, %v166
  %vm190 = vcmp.eq.s32.totalorder %v12, %v169
  %vm191 = vcmp.eq.s32.totalorder %v12, %v172
  %vm192 = vcmp.eq.s32.totalorder %v12, %v175
  %vm193 = vcmp.eq.s32.totalorder %v12, %v178
  %vm194 = vcmp.eq.s32.totalorder %v12, %v181
  %vm195 = vmor %vm130, %vm182
  %vm196 = vmor %vm131, %vm183
  %vm197 = vmor %vm132, %vm184
  %vm198 = vmor %vm133, %vm185
  %vm199 = vmor %vm134, %vm186
  %vm200 = vmor %vm135, %vm187
  %vm201 = vmor %vm136, %vm188
  %vm202 = vmor %vm137, %vm189
  %vm203 = vmor %vm138, %vm190
  %vm204 = vmor %vm139, %vm191
  %vm205 = vmor %vm140, %vm192
  %vm206 = vmor %vm141, %vm193
  %vm207 = vmor %vm142, %vm194
  %v208 = vsel %vm195, 1, 0
  %v209 = vsel %vm196, 1, 0
  %v210 = vsel %vm197, 1, 0
  %v211 = vsel %vm198, 1, 0
  %v212 = vsel %vm199, 1, 0
  %v213 = vsel %vm200, 1, 0
  %v214 = vsel %vm201, 1, 0
  %v215 = vsel %vm202, 1, 0
  %v216 = vsel %vm203, 1, 0
  %v217 = vsel %vm204, 1, 0
  %v218 = vsel %vm205, 1, 0
  %v219 = vsel %vm206, 1, 0
  %v220 = vsel %vm207, 1, 0
  %v221 = vcvt.s32.f32 %v208
  %v222 = vcvt.s32.f32 %v209
  %v223 = vcvt.s32.f32 %v210
  %v224 = vcvt.s32.f32 %v211
  %v225 = vcvt.s32.f32 %v212
  %v226 = vcvt.s32.f32 %v213
  %v227 = vcvt.s32.f32 %v214
  %v228 = vcvt.s32.f32 %v215
  %v229 = vcvt.s32.f32 %v216
  %v230 = vcvt.s32.f32 %v217
  %v231 = vcvt.s32.f32 %v218
  %v232 = vcvt.s32.f32 %v219
  %v233 = vcvt.s32.f32 %v220
  %v234 = vld [vmem:[%s1] sm:$0xff]
  %v235 = vld [vmem:[%s1 + $0x8] sm:$0xff]
  %v236 = vld [vmem:[%s1 + $0x10] sm:$0xff]
  %v237 = vld [vmem:[%s1 + $0x18] sm:$0xff]
  %v238 = vld [vmem:[%s1 + $0x20] sm:$0xff]
  %v239 = vld [vmem:[%s1 + $0x28] sm:$0xff]
  %v240 = vld [vmem:[%s1 + $0x30] sm:$0xff]
  %v241 = vld [vmem:[%s1 + $0x38] sm:$0xff]
  %v242 = vld [vmem:[%s1 + $0x40] sm:$0xff]
  %v243 = vld [vmem:[%s1 + $0x48] sm:$0xff]
  %v244 = vld [vmem:[%s1 + $0x50] sm:$0xff]
  %v245 = vld [vmem:[%s1 + $0x58] sm:$0xff]
  %v246 = vld [vmem:[%s1 + $0x60] sm:$0xff]
  %v247 = vld [vmem:[%s1 + $0x68] sm:$0xff]
  %v248 = vld [vmem:[%s1 + $0x70] sm:$0xff]
  %v249 = vld [vmem:[%s1 + $0x78] sm:$0xff]
  %250 = vmatprep.subr.mxu0 0.0
  %251 = vmatpush1.msra.mxu0 %v234
  %252 = vmatprep.subr.mxu0 0.0
  %253 = vmatpush1.msra.mxu0 %v235
  %254 = vmatprep.subr.mxu0 0.0
  %255 = vmatpush1.msra.mxu0 %v236
  %256 = vmatprep.subr.mxu0 0.0
  %257 = vmatpush1.msra.mxu0 %v237
  %258 = vmatprep.subr.mxu0 0.0
  %259 = vmatpush1.msra.mxu0 %v238
  %260 = vmatprep.subr.mxu0 0.0
  %261 = vmatpush1.msra.mxu0 %v239
  %262 = vmatprep.subr.mxu0 0.0
  %263 = vmatpush1.msra.mxu0 %v240
  %264 = vmatprep.subr.mxu0 0.0
  %265 = vmatpush1.msra.mxu0 %v241
  %266 = vmatprep.subr.mxu0 0.0
  %267 = vmatpush1.msra.mxu0 %v242
  %268 = vmatprep.subr.mxu0 0.0
  %269 = vmatpush1.msra.mxu0 %v243
  %270 = vmatprep.subr.mxu0 0.0
  %271 = vmatpush1.msra.mxu0 %v244
  %272 = vmatprep.subr.mxu0 0.0
  %273 = vmatpush1.msra.mxu0 %v245
  %274 = vmatprep.subr.mxu0 0.0
  %275 = vmatpush1.msra.mxu0 %v246
  %276 = vmatprep.subr.mxu0 0.0
  %277 = vmatpush1.msra.mxu0 %v247
  %278 = vmatprep.subr.mxu0 0.0
  %279 = vmatpush1.msra.mxu0 %v248
  %280 = vmatprep.subr.mxu0 0.0
  %281 = vmatpush1.msra.mxu0 %v249
  %282 = vmatprep.subr.mxu0 0.0
  %283 = vmatpush1.msra.mxu0 0.0
  %284 = vmatprep.subr.mxu0 0.0
  %285 = vmatpush1.msra.mxu0 0.0
  %286 = vmatprep.subr.mxu0 0.0
  %287 = vmatpush1.msra.mxu0 0.0
  %288 = vmatprep.subr.mxu0 0.0
  %289 = vmatpush1.msra.mxu0 0.0
  %290 = vmatprep.subr.mxu0 0.0
  %291 = vmatpush1.msra.mxu0 0.0
  %292 = vmatprep.subr.mxu0 0.0
  %293 = vmatpush1.msra.mxu0 0.0
  %294 = vmatprep.subr.mxu0 0.0
  %295 = vmatpush1.msra.mxu0 0.0
  %296 = vmatprep.subr.mxu0 0.0
  %297 = vmatpush1.msra.mxu0 0.0
  %298 = vmatprep.subr.mxu0 0.0
  %299 = vmatpush1.msra.mxu0 0.0
  %300 = vmatprep.subr.mxu0 0.0
  %301 = vmatpush1.msra.mxu0 0.0
  %302 = vmatprep.subr.mxu0 0.0
  %303 = vmatpush1.msra.mxu0 0.0
  %304 = vmatprep.subr.mxu0 0.0
  %305 = vmatpush1.msra.mxu0 0.0
  %306 = vmatprep.subr.mxu0 0.0
  %307 = vmatpush1.msra.mxu0 0.0
  %308 = vmatprep.subr.mxu0 0.0
  %309 = vmatpush1.msra.mxu0 0.0
  %310 = vmatprep.subr.mxu0 0.0
  %311 = vmatpush1.msra.mxu0 0.0
  %312 = vmatprep.subr.mxu0 0.0
  %313 = vmatpush1.msra.mxu0 0.0
  %314 = vmatprep.mubr.f32.mxu0 0.0
  %315 = vmatmul.mubr.f32.gmra.mrb[0].mxu0 %v221
  %v316 = vpop.f32.mrb[0].mxu0
  %v317 = vadd.f32 0.0, %v316
  %v318 = vpop.f32.mrb[0].mxu0
  %319 = vmatprep.mubr.f32.mxu0 0.0
  %320 = vmatmul.mubr.f32.gmra.mrb[0].mxu0 %v222
  %v321 = vpop.f32.mrb[0].mxu0
  %v322 = vadd.f32 0.0, %v321
  %v323 = vpop.f32.mrb[0].mxu0
  %324 = vmatprep.mubr.f32.mxu0 0.0
  %325 = vmatmul.mubr.f32.gmra.mrb[0].mxu0 %v223
  %v326 = vpop.f32.mrb[0].mxu0
  %v327 = vadd.f32 0.0, %v326
  %v328 = vpop.f32.mrb[0].mxu0
  %329 = vmatprep.mubr.f32.mxu0 0.0
  %330 = vmatmul.mubr.f32.gmra.mrb[0].mxu0 %v224
  %v331 = vpop.f32.mrb[0].mxu0
  %v332 = vadd.f32 0.0, %v331
  %v333 = vpop.f32.mrb[0].mxu0
  %334 = vmatprep.mubr.f32.mxu0 0.0
  %335 = vmatmul.mubr.f32.gmra.mrb[0].mxu0 %v225
  %v336 = vpop.f32.mrb[0].mxu0
  %v337 = vadd.f32 0.0, %v336
  %v338 = vpop.f32.mrb[0].mxu0
  %339 = vmatprep.mubr.f32.mxu0 0.0
  %340 = vmatmul.mubr.f32.gmra.mrb[0].mxu0 %v226
  %v341 = vpop.f32.mrb[0].mxu0
  %v342 = vadd.f32 0.0, %v341
  %v343 = vpop.f32.mrb[0].mxu0
  %344 = vmatprep.mubr.f32.mxu0 0.0
  %345 = vmatmul.mubr.f32.gmra.mrb[0].mxu0 %v227
  %v346 = vpop.f32.mrb[0].mxu0
  %v347 = vadd.f32 0.0, %v346
  %v348 = vpop.f32.mrb[0].mxu0
  %349 = vmatprep.mubr.f32.mxu0 0.0
  %350 = vmatmul.mubr.f32.gmra.mrb[0].mxu0 %v228
  %v351 = vpop.f32.mrb[0].mxu0
  %v352 = vadd.f32 0.0, %v351
  %v353 = vpop.f32.mrb[0].mxu0
  %354 = vmatprep.mubr.f32.mxu0 0.0
  %355 = vmatmul.mubr.f32.gmra.mrb[0].mxu0 %v229
  %v356 = vpop.f32.mrb[0].mxu0
  %v357 = vadd.f32 0.0, %v356
  %v358 = vpop.f32.mrb[0].mxu0
  %359 = vmatprep.mubr.f32.mxu0 0.0
  %360 = vmatmul.mubr.f32.gmra.mrb[0].mxu0 %v230
  %v361 = vpop.f32.mrb[0].mxu0
  %v362 = vadd.f32 0.0, %v361
  %v363 = vpop.f32.mrb[0].mxu0
  %364 = vmatprep.mubr.f32.mxu0 0.0
  %365 = vmatmul.mubr.f32.gmra.mrb[0].mxu0 %v231
  %v366 = vpop.f32.mrb[0].mxu0
  %v367 = vadd.f32 0.0, %v366
  %v368 = vpop.f32.mrb[0].mxu0
  %369 = vmatprep.mubr.f32.mxu0 0.0
  %370 = vmatmul.mubr.f32.gmra.mrb[0].mxu0 %v232
  %v371 = vpop.f32.mrb[0].mxu0
  %v372 = vadd.f32 0.0, %v371
  %v373 = vpop.f32.mrb[0].mxu0
  %374 = vmatprep.mubr.f32.mxu0 0.0
  %375 = vmatmul.mubr.f32.gmra.mrb[0].mxu0 %v233
  %v376 = vpop.f32.mrb[0].mxu0
  %v377 = vadd.f32 0.0, %v376
  %v378 = vpop.f32.mrb[0].mxu0
  %379 = vdwg.mxu0
  %vm380 = vcmask 261120
  %381 = vst.msk [vmem:[%s2] sm:$0xff] %vm380, %v317
  %382 = vst.msk [vmem:[%s2 + $0x8] sm:$0xff] %vm380, %v322
  %383 = vst.msk [vmem:[%s2 + $0x10] sm:$0xff] %vm380, %v327
  %384 = vst.msk [vmem:[%s2 + $0x18] sm:$0xff] %vm380, %v332
  %385 = vst.msk [vmem:[%s2 + $0x20] sm:$0xff] %vm380, %v337
  %386 = vst.msk [vmem:[%s2 + $0x28] sm:$0xff] %vm380, %v342
  %387 = vst.msk [vmem:[%s2 + $0x30] sm:$0xff] %vm380, %v347
  %388 = vst.msk [vmem:[%s2 + $0x38] sm:$0xff] %vm380, %v352
  %389 = vst.msk [vmem:[%s2 + $0x40] sm:$0xff] %vm380, %v357
  %390 = vst.msk [vmem:[%s2 + $0x48] sm:$0xff] %vm380, %v362
  %391 = vst.msk [vmem:[%s2 + $0x50] sm:$0xff] %vm380, %v367
  %392 = vst.msk [vmem:[%s2 + $0x58] sm:$0xff] %vm380, %v372
  %393 = vst.msk [vmem:[%s2 + $0x60] sm:$0xff] %vm380, %v377
  // Predicated region
  $region10: #{tpu_custom_call.1} parent=0 // pred_check
    _
  $region11: #{tpu_custom_call.1} parent=0 // pred_check_branch
    %395 = sbr.rel (0) target = $region13
  $region12: #{tpu_custom_call.1} parent=0 // pred_region
    _
  $region13: #{tpu_custom_call.1} parent=0 // pred_fallthru
    _
  // Predicated region
  $region14: #{tpu_custom_call.1} parent=0 // pred_check
    _
  $region15: #{tpu_custom_call.1} parent=0 // pred_check_branch
    %397 = sbr.rel (0) target = $region17
  $region16: #{tpu_custom_call.1} parent=0 // pred_region
    _
  $region17: #{tpu_custom_call.1} parent=0 // pred_fallthru
    _

</llo_original>
